<compile_context>
chip_gen: v5e
topology: v5e:2x2
jax: 0.10.0
libtpu: 0.0.40
codegen_flags: <defaults>
</compile_context>

<pallas_src>
import jax
import jax.numpy as jnp
from jax.experimental import pallas as pl
from jax.experimental.pallas import tpu as pltpu

LANES = 128  # TPU lane width; every weight block is padded to (LANES, LANES).


def _round_up(n, m):
    return ((n + m - 1) // m) * m


def _choose_tile_b(batch, max_tile_rows):
    """Batch tile: multiple of 16 rows (bf16 sublane packing), capped so the
    double-buffered x/out tiles + intermediates stay far under v7x's VMEM."""
    rounded = _round_up(batch, 16)
    if rounded > max_tile_rows:
        return max_tile_rows
    # Large single-tile batches: split into >=2 grid steps so the "parallel"
    # batch axis can be sharded across v7x's two TensorCores.
    if rounded >= 4096:
        return _round_up(pl.cdiv(rounded, 2), 16)
    return rounded


# ----------------------------------------------------------------------------
# Kernel
# ----------------------------------------------------------------------------
def generic_block_kernel(x_ref, w_ref, b_ref, out_ref):
    """x_ref: (tile_b, 128) bf16 tile; w_ref: (6, 128, 128) bf16 (VMEM resident);
    b_ref: (8, 128) f32 (VMEM resident);
    out_ref: (tile_b, 128) bf16 slab = [backcast | forecast | zero padding]."""

    def dense(h, layer, bias_row=None, relu=False, out_dtype=jnp.bfloat16):
        # bf16 x bf16 -> f32 accumulation on the MXU.
        acc = jnp.dot(h, w_ref[layer], preferred_element_type=jnp.float32)
        if bias_row is not None:
            acc = acc + b_ref[bias_row:bias_row + 1, :]
        if relu:
            acc = jnp.maximum(acc, 0.0)
        return acc.astype(out_dtype)

    h = dense(x_ref[...], 0, bias_row=0)                      # fc1 (no ReLU, per reference)
    h = dense(h, 1, bias_row=1, relu=True)                    # fc2 + ReLU
    h = dense(h, 2, bias_row=2, relu=True)                    # fc3 + ReLU
    h = dense(h, 3, bias_row=3, relu=True)                    # fc4 + ReLU
    theta = dense(h, 4)                                       # fused [theta_b | theta_f] (bias-free)
    out_ref[...] = dense(theta, 5, bias_row=4,                # fused [backcast | forecast] heads
                         out_dtype=out_ref.dtype)


# ----------------------------------------------------------------------------
# Wrapper
# ----------------------------------------------------------------------------
def generic_block(x, packed, *, max_tile_rows=8192):
    """x: (batch, backcast_length) f32. packed: output of pack_params."""
    batch, in_len = x.shape
    bc_len = packed["backcast_length"]
    fc_len = packed["forecast_length"]

    tile_b = _choose_tile_b(batch, max_tile_rows)
    padded_batch = _round_up(batch, tile_b)
    grid = (padded_batch // tile_b,)

    # Single fused pad of the bf16 cast (lane-dense input slab, zeros beyond data).
    x_pad = jnp.pad(x.astype(jnp.bfloat16),
                    ((0, padded_batch - batch), (0, LANES - in_len)))

    out = pl.pallas_call(
        generic_block_kernel,
        out_shape=jax.ShapeDtypeStruct((padded_batch, LANES), jnp.bfloat16),
        grid_spec=pltpu.PrefetchScalarGridSpec(
            num_scalar_prefetch=0,
            grid=grid,
            in_specs=[
                pl.BlockSpec((tile_b, LANES), lambda i: (i, 0)),          # x tiles (pipelined)
                pl.BlockSpec(memory_space=pltpu.MemorySpace.VMEM),        # weights: whole-array, single-buffered
                pl.BlockSpec(memory_space=pltpu.MemorySpace.VMEM),        # biases:  whole-array, single-buffered
            ],
            out_specs=pl.BlockSpec((tile_b, LANES), lambda i: (i, 0)),
        ),
        compiler_params=pltpu.CompilerParams(
            dimension_semantics=("parallel",),      # batch tiles shard across v7x's 2 TCs
            vmem_limit_bytes=48 * 1024 * 1024,      # above defaults, below v7x physical
        ),
    )(x_pad, packed["w"], packed["b"])

    out_f32 = out[:batch].astype(jnp.float32)
    backcast = out_f32[:, :bc_len]
    forecast = out_f32[:, bc_len:bc_len + fc_len]
    return backcast, forecast


# ----------------------------------------------------------------------------
# Parameter init (PyTorch-Linear-like) and packing
# ----------------------------------------------------------------------------
def init_params(key, units, thetas_dim, backcast_length, forecast_length):
    """Raw parameters stored as (in_features, out_features) and 1-D biases,
    equivalent to PyTorch's y = x @ W.T + b with W of shape (out, in)."""
    def linear(k, fan_in, fan_out, bias=True):
        k_w, k_b = jax.random.split(k)
        bound = 1.0 / (fan_in ** 0.5)
        w = jax.random.uniform(k_w, (fan_in, fan_out), jnp.float32, -bound, bound)
        b = (jax.random.uniform(k_b, (fan_out,), jnp.float32, -bound, bound)
             if bias else None)
        return w, b

    keys = jax.random.split(key, 8)
    w1, b1 = linear(keys[0], backcast_length, units)
    w2, b2 = linear(keys[1], units, units)
    w3, b3 = linear(keys[2], units, units)
    w4, b4 = linear(keys[3], units, units)
    w_tb, _ = linear(keys[4], units, thetas_dim, bias=False)
    w_tf, _ = linear(keys[5], units, thetas_dim, bias=False)
    w_bc, b_bc = linear(keys[6], thetas_dim, backcast_length)
    w_fc, b_fc = linear(keys[7], thetas_dim, forecast_length)
    return dict(w1=w1, b1=b1, w2=w2, b2=b2, w3=w3, b3=b3, w4=w4, b4=b4,
                w_tb=w_tb, w_tf=w_tf, w_bc=w_bc, b_bc=b_bc, w_fc=w_fc, b_fc=b_fc)


def pack_params(p, units, thetas_dim, backcast_length, forecast_length):
    """Pack all weights into one (6,128,128) bf16 slab and biases into one
    (8,128) f32 slab. Theta heads are fused side-by-side; output heads are
    fused block-diagonally so a single dot yields [backcast | forecast]."""
    assert max(units, 2 * thetas_dim, backcast_length,
               backcast_length + forecast_length) <= LANES

    def pad_block(w):
        blk = jnp.zeros((LANES, LANES), jnp.float32)
        return blk.at[:w.shape[0], :w.shape[1]].set(w)

    # Fused theta projection: (units, 2*thetas_dim) = [w_tb | w_tf].
    w_theta = jnp.concatenate([p["w_tb"], p["w_tf"]], axis=1)

    # Fused block-diagonal head: (2*thetas_dim, bc_len + fc_len).
    w_head = jnp.zeros((2 * thetas_dim, backcast_length + forecast_length),
                       jnp.float32)
    w_head = w_head.at[:thetas_dim, :backcast_length].set(p["w_bc"])
    w_head = w_head.at[thetas_dim:, backcast_length:].set(p["w_fc"])

    W = jnp.stack([pad_block(p["w1"]), pad_block(p["w2"]), pad_block(p["w3"]),
                   pad_block(p["w4"]), pad_block(w_theta), pad_block(w_head)],
                  axis=0).astype(jnp.bfloat16)

    B = jnp.zeros((8, LANES), jnp.float32)
    B = B.at[0, :units].set(p["b1"])
    B = B.at[1, :units].set(p["b2"])
    B = B.at[2, :units].set(p["b3"])
    B = B.at[3, :units].set(p["b4"])
    B = B.at[4, :backcast_length].set(p["b_bc"])
    B = B.at[4, backcast_length:backcast_length + forecast_length].set(p["b_fc"])

    return dict(w=W, b=B,
                backcast_length=backcast_length, forecast_length=forecast_length)


# ----------------------------------------------------------------------------
# Pure-JAX references
# ----------------------------------------------------------------------------
def reference_f32(x, p):
    h = x @ p["w1"] + p["b1"]
    h = jnp.maximum(h @ p["w2"] + p["b2"], 0.0)
    h = jnp.maximum(h @ p["w3"] + p["b3"], 0.0)
    h = jnp.maximum(h @ p["w4"] + p["b4"], 0.0)
    theta_b = h @ p["w_tb"]
    theta_f = h @ p["w_tf"]
    return theta_b @ p["w_bc"] + p["b_bc"], theta_f @ p["w_fc"] + p["b_fc"]


def reference_bf16(x, p):
    """Same math as the kernel: bf16 dot inputs, f32 accumulation / bias / ReLU,
    bf16 inter-layer activations, bf16 output slab."""
    def dot(a, b):
        return jnp.dot(a.astype(jnp.bfloat16), b.astype(jnp.bfloat16),
                       preferred_element_type=jnp.float32)
    h = (dot(x, p["w1"]) + p["b1"]).astype(jnp.bfloat16)
    h = jnp.maximum(dot(h, p["w2"]) + p["b2"], 0.0).astype(jnp.bfloat16)
    h = jnp.maximum(dot(h, p["w3"]) + p["b3"], 0.0).astype(jnp.bfloat16)
    h = jnp.maximum(dot(h, p["w4"]) + p["b4"], 0.0).astype(jnp.bfloat16)
    theta_b = dot(h, p["w_tb"]).astype(jnp.bfloat16)
    theta_f = dot(h, p["w_tf"]).astype(jnp.bfloat16)
    bc = (dot(theta_b, p["w_bc"]) + p["b_bc"]).astype(jnp.bfloat16)
    fc = (dot(theta_f, p["w_fc"]) + p["b_fc"]).astype(jnp.bfloat16)
    return bc.astype(jnp.float32), fc.astype(jnp.float32)


# ----------------------------------------------------------------------------
if __name__ == "__main__":
    # Shapes consistent with the module's defaults.
    batch = 8
    units = 32
    thetas_dim = 8
    backcast_length = 10
    forecast_length = 5

    key = jax.random.PRNGKey(0)
    k_x, k_p = jax.random.split(key)
    x = jax.random.normal(k_x, (batch, backcast_length), jnp.float32)
    raw = init_params(k_p, units, thetas_dim, backcast_length, forecast_length)
    packed = pack_params(raw, units, thetas_dim, backcast_length, forecast_length)

    backcast, forecast = generic_block(x, packed)
    jax.block_until_ready((backcast, forecast))

    assert backcast.shape == (batch, backcast_length)
    assert forecast.shape == (batch, forecast_length)

    # Exact-math check against a bf16-matched reference.
    bc_m, fc_m = reference_bf16(x, raw)
    assert jnp.allclose(backcast, bc_m, atol=2e-2, rtol=2e-2)
    assert jnp.allclose(forecast, fc_m, atol=2e-2, rtol=2e-2)

    # Sanity check against the full-f32 reference (bf16 quantization tolerance).
    bc_f, fc_f = reference_f32(x, raw)
    assert jnp.allclose(backcast, bc_f, atol=1e-1, rtol=1e-1)
    assert jnp.allclose(forecast, fc_f, atol=1e-1, rtol=1e-1)

    print("KERNEL_OK")
</pallas_src>

<mosaic_0001>
module attributes {stable_mosaic.version = 11 : i64} {
  func.func @generic_block_kernel(%arg0: i32, %arg1: memref<16x128xbf16, #tpu.memory_space<vmem>>, %arg2: memref<6x128x128xbf16, #tpu.memory_space<vmem>>, %arg3: memref<8x128xf32, #tpu.memory_space<vmem>>, %arg4: memref<16x128xbf16, #tpu.memory_space<vmem>>) attributes {dimension_semantics = [#tpu.dimension_semantics<parallel>], iteration_bounds = array<i64: 1>, scalar_prefetch = 0 : i64, scratch_operands = 0 : i64, tpu.core_type = #tpu.core_type<tc>, window_params = [{transform_indices = @transform_0, window_bounds = array<i64: 16, 128>}, {pipeline_mode = #tpu.pipeline_mode<synchronous>, transform_indices = @transform_1, window_bounds = array<i64: 6, 128, 128>}, {pipeline_mode = #tpu.pipeline_mode<synchronous>, transform_indices = @transform_2, window_bounds = array<i64: 8, 128>}, {transform_indices = @transform_3, window_bounds = array<i64: 16, 128>}]} {
    %c0 = arith.constant 0 : index
    %c0_0 = arith.constant 0 : index
    %0 = vector.load %arg1[%c0, %c0_0] : memref<16x128xbf16, #tpu.memory_space<vmem>>, vector<16x128xbf16>
    %c0_1 = arith.constant 0 : index
    %c0_2 = arith.constant 0 : index
    %c0_3 = arith.constant 0 : index
    %1 = vector.load %arg2[%c0_1, %c0_2, %c0_3] : memref<6x128x128xbf16, #tpu.memory_space<vmem>>, vector<1x128x128xbf16>
    %2 = vector.shape_cast %1 : vector<1x128x128xbf16> to vector<128x128xbf16>
    %cst = arith.constant dense<0.000000e+00> : vector<16x128xf32>
    %3 = tpu.matmul %0, %2, %cst {dimension_numbers = #tpu.dot_dimension_numbers<[1], [0], [0], [1], [0, 0, 1, 1], [], []>} : vector<16x128xbf16>, vector<128x128xbf16>, vector<16x128xf32> -> vector<16x128xf32>
    %c0_4 = arith.constant 0 : index
    %c0_5 = arith.constant 0 : index
    %4 = vector.load %arg3[%c0_4, %c0_5] : memref<8x128xf32, #tpu.memory_space<vmem>>, vector<1x128xf32>
    %5 = vector.broadcast %4 : vector<1x128xf32> to vector<16x128xf32>
    %6 = arith.addf %3, %5 : vector<16x128xf32>
    %7 = arith.truncf %6 : vector<16x128xf32> to vector<16x128xbf16>
    %c1 = arith.constant 1 : index
    %c0_6 = arith.constant 0 : index
    %c0_7 = arith.constant 0 : index
    %8 = vector.load %arg2[%c1, %c0_6, %c0_7] : memref<6x128x128xbf16, #tpu.memory_space<vmem>>, vector<1x128x128xbf16>
    %9 = vector.shape_cast %8 : vector<1x128x128xbf16> to vector<128x128xbf16>
    %cst_8 = arith.constant dense<0.000000e+00> : vector<16x128xf32>
    %10 = tpu.matmul %7, %9, %cst_8 {dimension_numbers = #tpu.dot_dimension_numbers<[1], [0], [0], [1], [0, 0, 1, 1], [], []>} : vector<16x128xbf16>, vector<128x128xbf16>, vector<16x128xf32> -> vector<16x128xf32>
    %c1_9 = arith.constant 1 : index
    %c0_10 = arith.constant 0 : index
    %11 = vector.load %arg3[%c1_9, %c0_10] : memref<8x128xf32, #tpu.memory_space<vmem>>, vector<1x128xf32>
    %12 = vector.broadcast %11 : vector<1x128xf32> to vector<16x128xf32>
    %13 = arith.addf %10, %12 : vector<16x128xf32>
    %cst_11 = arith.constant 0.000000e+00 : f32
    %14 = vector.broadcast %cst_11 : f32 to vector<16x128xf32>
    %15 = arith.maximumf %13, %14 : vector<16x128xf32>
    %16 = arith.truncf %15 : vector<16x128xf32> to vector<16x128xbf16>
    %c2 = arith.constant 2 : index
    %c0_12 = arith.constant 0 : index
    %c0_13 = arith.constant 0 : index
    %17 = vector.load %arg2[%c2, %c0_12, %c0_13] : memref<6x128x128xbf16, #tpu.memory_space<vmem>>, vector<1x128x128xbf16>
    %18 = vector.shape_cast %17 : vector<1x128x128xbf16> to vector<128x128xbf16>
    %cst_14 = arith.constant dense<0.000000e+00> : vector<16x128xf32>
    %19 = tpu.matmul %16, %18, %cst_14 {dimension_numbers = #tpu.dot_dimension_numbers<[1], [0], [0], [1], [0, 0, 1, 1], [], []>} : vector<16x128xbf16>, vector<128x128xbf16>, vector<16x128xf32> -> vector<16x128xf32>
    %c2_15 = arith.constant 2 : index
    %c0_16 = arith.constant 0 : index
    %20 = vector.load %arg3[%c2_15, %c0_16] : memref<8x128xf32, #tpu.memory_space<vmem>>, vector<1x128xf32>
    %21 = vector.broadcast %20 : vector<1x128xf32> to vector<16x128xf32>
    %22 = arith.addf %19, %21 : vector<16x128xf32>
    %cst_17 = arith.constant 0.000000e+00 : f32
    %23 = vector.broadcast %cst_17 : f32 to vector<16x128xf32>
    %24 = arith.maximumf %22, %23 : vector<16x128xf32>
    %25 = arith.truncf %24 : vector<16x128xf32> to vector<16x128xbf16>
    %c3 = arith.constant 3 : index
    %c0_18 = arith.constant 0 : index
    %c0_19 = arith.constant 0 : index
    %26 = vector.load %arg2[%c3, %c0_18, %c0_19] : memref<6x128x128xbf16, #tpu.memory_space<vmem>>, vector<1x128x128xbf16>
    %27 = vector.shape_cast %26 : vector<1x128x128xbf16> to vector<128x128xbf16>
    %cst_20 = arith.constant dense<0.000000e+00> : vector<16x128xf32>
    %28 = tpu.matmul %25, %27, %cst_20 {dimension_numbers = #tpu.dot_dimension_numbers<[1], [0], [0], [1], [0, 0, 1, 1], [], []>} : vector<16x128xbf16>, vector<128x128xbf16>, vector<16x128xf32> -> vector<16x128xf32>
    %c3_21 = arith.constant 3 : index
    %c0_22 = arith.constant 0 : index
    %29 = vector.load %arg3[%c3_21, %c0_22] : memref<8x128xf32, #tpu.memory_space<vmem>>, vector<1x128xf32>
    %30 = vector.broadcast %29 : vector<1x128xf32> to vector<16x128xf32>
    %31 = arith.addf %28, %30 : vector<16x128xf32>
    %cst_23 = arith.constant 0.000000e+00 : f32
    %32 = vector.broadcast %cst_23 : f32 to vector<16x128xf32>
    %33 = arith.maximumf %31, %32 : vector<16x128xf32>
    %34 = arith.truncf %33 : vector<16x128xf32> to vector<16x128xbf16>
    %c4 = arith.constant 4 : index
    %c0_24 = arith.constant 0 : index
    %c0_25 = arith.constant 0 : index
    %35 = vector.load %arg2[%c4, %c0_24, %c0_25] : memref<6x128x128xbf16, #tpu.memory_space<vmem>>, vector<1x128x128xbf16>
    %36 = vector.shape_cast %35 : vector<1x128x128xbf16> to vector<128x128xbf16>
    %cst_26 = arith.constant dense<0.000000e+00> : vector<16x128xf32>
    %37 = tpu.matmul %34, %36, %cst_26 {dimension_numbers = #tpu.dot_dimension_numbers<[1], [0], [0], [1], [0, 0, 1, 1], [], []>} : vector<16x128xbf16>, vector<128x128xbf16>, vector<16x128xf32> -> vector<16x128xf32>
    %38 = arith.truncf %37 : vector<16x128xf32> to vector<16x128xbf16>
    %c5 = arith.constant 5 : index
    %c0_27 = arith.constant 0 : index
    %c0_28 = arith.constant 0 : index
    %39 = vector.load %arg2[%c5, %c0_27, %c0_28] : memref<6x128x128xbf16, #tpu.memory_space<vmem>>, vector<1x128x128xbf16>
    %40 = vector.shape_cast %39 : vector<1x128x128xbf16> to vector<128x128xbf16>
    %cst_29 = arith.constant dense<0.000000e+00> : vector<16x128xf32>
    %41 = tpu.matmul %38, %40, %cst_29 {dimension_numbers = #tpu.dot_dimension_numbers<[1], [0], [0], [1], [0, 0, 1, 1], [], []>} : vector<16x128xbf16>, vector<128x128xbf16>, vector<16x128xf32> -> vector<16x128xf32>
    %c4_30 = arith.constant 4 : index
    %c0_31 = arith.constant 0 : index
    %42 = vector.load %arg3[%c4_30, %c0_31] : memref<8x128xf32, #tpu.memory_space<vmem>>, vector<1x128xf32>
    %43 = vector.broadcast %42 : vector<1x128xf32> to vector<16x128xf32>
    %44 = arith.addf %41, %43 : vector<16x128xf32>
    %45 = arith.truncf %44 : vector<16x128xf32> to vector<16x128xbf16>
    %c0_32 = arith.constant 0 : index
    %c0_33 = arith.constant 0 : index
    %46 = vector.load %arg4[%c0_32, %c0_33] : memref<16x128xbf16, #tpu.memory_space<vmem>>, vector<16x128xbf16>
    tpu.vector_store %arg4[%c0_32, %c0_33], %45 {strides = array<i32>} : memref<16x128xbf16, #tpu.memory_space<vmem>>, vector<16x128xbf16>,
    return
  }
  func.func @transform_0(%arg0: i32) -> (i32, i32) {
    %c0_i32 = arith.constant 0 : i32
    %c0_i32_0 = arith.constant 0 : i32
    return %arg0, %c0_i32 : i32, i32
  }
  func.func @transform_1(%arg0: i32) -> (i32, i32, i32) {
    %c0_i32 = arith.constant 0 : i32
    %c0_i32_0 = arith.constant 0 : i32
    %c0_i32_1 = arith.constant 0 : i32
    %c0_i32_2 = arith.constant 0 : i32
    return %c0_i32, %c0_i32_0, %c0_i32_1 : i32, i32, i32
  }
  func.func @transform_2(%arg0: i32) -> (i32, i32) {
    %c0_i32 = arith.constant 0 : i32
    %c0_i32_0 = arith.constant 0 : i32
    %c0_i32_1 = arith.constant 0 : i32
    return %c0_i32, %c0_i32_0 : i32, i32
  }
  func.func @transform_3(%arg0: i32) -> (i32, i32) {
    %c0_i32 = arith.constant 0 : i32
    %c0_i32_0 = arith.constant 0 : i32
    return %arg0, %c0_i32 : i32, i32
  }
}

</mosaic_0001>

<llo_original>
// kernel: tpu_custom_call.1
$region0: #{tpu_custom_call.1}
  #allocation0 [shape = 'u32[]', space=smem, size = 0x4, offset = 0x4, fixed_abs, tag = 'smem constant byte address 0x4 - core index']
  #allocation1 [shape = 'u32[72,128]{1,0:T(1,128)}', space=vmem, size = 0x9000, scoped, tag = 'internal scratch']
  %s0 = inlined_call_operand.hbm [shape: bf16[16,128], index: 0, kind: input, shape index: {}]
  %s1 = inlined_call_operand.hbm [shape: bf16[6,128,128], index: 1, kind: input, shape index: {}]
  %s2 = inlined_call_operand.hbm [shape: f32[8,128], index: 2, kind: input, shape index: {}]
  %s3 = inlined_call_operand.hbm [shape: bf16[16,128], index: 3, kind: output, shape index: {}]
  %s4 = sld [smem:[#allocation0]]
  $region34: #{tpu_custom_call.1} parent=0
    _
  %s6 = ssub.s32 1, %s4
  %s7 = scalar_select 0, %s6, %s4
  $region1: #{tpu_custom_call.1} parent=0
    #allocation2 [shape = 'u8[4096]{0}', space=vmem, size = 0x1000, scoped, tag = 'input window, operand 0, single buffered']
    #allocation3 [shape = 's32[1]{0}', space=sflag, size = 0x4, scoped, tag = 'scoped memory for tpu_custom_call.1']
    #allocation4 [shape = 's32[1]{0}', space=sflag, size = 0x4, scoped, tag = 'scoped memory for tpu_custom_call.1']
    #allocation5 [shape = 'u8[196608]{0}', space=vmem, size = 0x30000, scoped, tag = 'input window, operand 1, single buffered']
    #allocation6 [shape = 's32[1]{0}', space=sflag, size = 0x4, scoped, tag = 'scoped memory for tpu_custom_call.1']
    #allocation7 [shape = 'u8[4096]{0}', space=vmem, size = 0x1000, scoped, tag = 'input window, operand 2, single buffered']
    #allocation8 [shape = 'u8[4096]{0}', space=vmem, size = 0x1000, scoped, tag = 'output window, operand 0, single buffered']
    %8 = vsyncpa [#allocation3], 0
    %9 = vsyncpa [#allocation6], 0
    %10 = vsyncpa [#allocation4], 0
    // Predicated region
    $region2: #{tpu_custom_call.1} parent=1 // pred_check
      _
    $region3: #{tpu_custom_call.1} parent=1 // pred_check_branch
      %12 = sbr.rel (0) target = $region5
    $region4: #{tpu_custom_call.1} parent=1 // pred_region
      %14 = vsyncadd [#allocation3], 0
      %s15 = sshll.u32 %s0, 4
      %s16 = int_to_ptr.hbm [resolvable:$true] %s15
      %s17 = sshll.u32 [#allocation2], 4
      %s18 = int_to_ptr.vmem [resolvable:$true] %s17
      %23 = dma.hbm_to_vmem [thread:$0]  %s16, 128, %s18, [#allocation3], 64, 64, 4
    $region5: #{tpu_custom_call.1} parent=1 // pred_fallthru
      _
    // Predicated region
    $region6: #{tpu_custom_call.1} parent=1 // pred_check
      _
    $region7: #{tpu_custom_call.1} parent=1 // pred_check_branch
      %25 = sbr.rel (0) target = $region9
    $region8: #{tpu_custom_call.1} parent=1 // pred_region
      %27 = vsyncadd [#allocation6], 0
      %s28 = sshll.u32 %s1, 4
      %s29 = int_to_ptr.hbm [resolvable:$true] %s28
      %s30 = sshll.u32 [#allocation5], 4
      %s31 = int_to_ptr.vmem [resolvable:$true] %s30
      %36 = dma.hbm_to_vmem [thread:$0]  %s29, 6144, %s31, [#allocation6], 64, 64, 4
    $region9: #{tpu_custom_call.1} parent=1 // pred_fallthru
      _
    // Predicated region
    $region10: #{tpu_custom_call.1} parent=1 // pred_check
      _
    $region11: #{tpu_custom_call.1} parent=1 // pred_check_branch
      %38 = sbr.rel (0) target = $region13
    $region12: #{tpu_custom_call.1} parent=1 // pred_region
      %40 = vsyncadd [#allocation6], 0
      %s42 = sshll.u32 %s2, 4
      %s43 = int_to_ptr.hbm [resolvable:$true] %s42
      %s44 = sshll.u32 [#allocation7], 4
      %s45 = int_to_ptr.vmem [resolvable:$true] %s44
      %47 = dma.hbm_to_vmem [thread:$0]  %s43, 128, %s45, [#allocation6]
    $region13: #{tpu_custom_call.1} parent=1 // pred_fallthru
      _
    // Predicated region
    $region14: #{tpu_custom_call.1} parent=1 // pred_check
      _
    $region15: #{tpu_custom_call.1} parent=1 // pred_check_branch
      %49 = sbr.rel (0) target = $region17
    $region16: #{tpu_custom_call.1} parent=1 // pred_region
      %51 = dma.done [#allocation3], 128
    $region17: #{tpu_custom_call.1} parent=1 // pred_fallthru
      _
    // Predicated region
    $region18: #{tpu_custom_call.1} parent=1 // pred_check
      _
    $region19: #{tpu_custom_call.1} parent=1 // pred_check_branch
      %53 = sbr.rel (0) target = $region21
    $region20: #{tpu_custom_call.1} parent=1 // pred_region
      %55 = dma.done [#allocation6], 6144
    $region21: #{tpu_custom_call.1} parent=1 // pred_fallthru
      _
    // Predicated region
    $region22: #{tpu_custom_call.1} parent=1 // pred_check
      _
    $region23: #{tpu_custom_call.1} parent=1 // pred_check_branch
      %57 = sbr.rel (0) target = $region25
    $region24: #{tpu_custom_call.1} parent=1 // pred_region
      %59 = dma.done [#allocation6], 128
    $region25: #{tpu_custom_call.1} parent=1 // pred_fallthru
      _
    %v60 = vld [vmem:[#allocation2] sm:$0xf]
    %v61 = vld [vmem:[#allocation2 + $0x4] sm:$0xf]
    %v62 = vld [vmem:[#allocation5] sm:$0xf]
    %v63 = vld [vmem:[#allocation5 + $0x4] sm:$0xf]
    %v64 = vld [vmem:[#allocation5 + $0x8] sm:$0xf]
    %v65 = vld [vmem:[#allocation5 + $0xc] sm:$0xf]
    %v66 = vld [vmem:[#allocation5 + $0x10] sm:$0xf]
    %v67 = vld [vmem:[#allocation5 + $0x14] sm:$0xf]
    %v68 = vld [vmem:[#allocation5 + $0x18] sm:$0xf]
    %v69 = vld [vmem:[#allocation5 + $0x1c] sm:$0xf]
    %v70 = vld [vmem:[#allocation5 + $0x20] sm:$0xf]
    %v71 = vld [vmem:[#allocation5 + $0x24] sm:$0xf]
    %v72 = vld [vmem:[#allocation5 + $0x28] sm:$0xf]
    %v73 = vld [vmem:[#allocation5 + $0x2c] sm:$0xf]
    %v74 = vld [vmem:[#allocation5 + $0x30] sm:$0xf]
    %v75 = vld [vmem:[#allocation5 + $0x34] sm:$0xf]
    %v76 = vld [vmem:[#allocation5 + $0x38] sm:$0xf]
    %v77 = vld [vmem:[#allocation5 + $0x3c] sm:$0xf]
    %v78 = vld [vmem:[#allocation7] sm:$0x1]
    %v79 = vperm.slane %v78, 0
    %v82 = vunpack.c.l.b16 %v60
    %v83 = vunpack.c.l.b16 %v61
    %v84 = vpack.c.b16 %v83, %v82
    %v102 = vunpack.c.l.b16 %v62
    %v103 = vunpack.c.l.b16 %v63
    %v104 = vunpack.c.l.b16 %v64
    %v105 = vunpack.c.l.b16 %v65
    %v106 = vunpack.c.l.b16 %v66
    %v107 = vunpack.c.l.b16 %v67
    %v108 = vunpack.c.l.b16 %v68
    %v109 = vunpack.c.l.b16 %v69
    %v110 = vunpack.c.l.b16 %v70
    %v111 = vunpack.c.l.b16 %v71
    %v112 = vunpack.c.l.b16 %v72
    %v113 = vunpack.c.l.b16 %v73
    %v114 = vunpack.c.l.b16 %v74
    %v115 = vunpack.c.l.b16 %v75
    %v116 = vunpack.c.l.b16 %v76
    %v117 = vunpack.c.l.b16 %v77
    %v118 = vpack.c.b16 %v103, %v102
    %v119 = vpack.c.b16 %v105, %v104
    %v120 = vpack.c.b16 %v107, %v106
    %v121 = vpack.c.b16 %v109, %v108
    %v122 = vpack.c.b16 %v111, %v110
    %v123 = vpack.c.b16 %v113, %v112
    %v124 = vpack.c.b16 %v115, %v114
    %v125 = vpack.c.b16 %v117, %v116
    %134 = vmatpush.bf16.msra.mxu0 %v125
    %135 = vmatpush.bf16.msra.mxu0 %v124
    %136 = vmatpush.bf16.msra.mxu0 %v123
    %137 = vmatpush.bf16.msra.mxu0 %v122
    %138 = vmatpush.bf16.msra.mxu0 %v121
    %139 = vmatpush.bf16.msra.mxu0 %v120
    %140 = vmatpush.bf16.msra.mxu0 %v119
    %141 = vmatpush.bf16.msra.mxu0 %v118
    %142 = vmatmul.bf16.gmra.mxu0 %v84
    %v143 = vpop.f32.mrf.mxu0
    %v144 = vadd.f32 %v79, %v143
    %v145 = vpop.f32.mrf.mxu0
    %v146 = vadd.f32 %v79, %v145
    %147 = vdwg.mxu0
    %v148 = vpack.c.bf16 %v146, %v144
    %s149 = scalar_lea.vmem [#allocation5], 64
    %v150 = vld [vmem:[%s149] sm:$0xf]
    %v151 = vld [vmem:[%s149 + $0x4] sm:$0xf]
    %v152 = vld [vmem:[%s149 + $0x8] sm:$0xf]
    %v153 = vld [vmem:[%s149 + $0xc] sm:$0xf]
    %v154 = vld [vmem:[%s149 + $0x10] sm:$0xf]
    %v155 = vld [vmem:[%s149 + $0x14] sm:$0xf]
    %v156 = vld [vmem:[%s149 + $0x18] sm:$0xf]
    %v157 = vld [vmem:[%s149 + $0x1c] sm:$0xf]
    %v158 = vld [vmem:[%s149 + $0x20] sm:$0xf]
    %v159 = vld [vmem:[%s149 + $0x24] sm:$0xf]
    %v160 = vld [vmem:[%s149 + $0x28] sm:$0xf]
    %v161 = vld [vmem:[%s149 + $0x2c] sm:$0xf]
    %v162 = vld [vmem:[%s149 + $0x30] sm:$0xf]
    %v163 = vld [vmem:[%s149 + $0x34] sm:$0xf]
    %v164 = vld [vmem:[%s149 + $0x38] sm:$0xf]
    %v165 = vld [vmem:[%s149 + $0x3c] sm:$0xf]
    %v166 = vld [vmem:[#allocation7 + $0x1] sm:$0x1]
    %v167 = vperm.slane %v166, 0
    %v184 = vunpack.c.l.b16 %v150
    %v185 = vunpack.c.l.b16 %v151
    %v186 = vunpack.c.l.b16 %v152
    %v187 = vunpack.c.l.b16 %v153
    %v188 = vunpack.c.l.b16 %v154
    %v189 = vunpack.c.l.b16 %v155
    %v190 = vunpack.c.l.b16 %v156
    %v191 = vunpack.c.l.b16 %v157
    %v192 = vunpack.c.l.b16 %v158
    %v193 = vunpack.c.l.b16 %v159
    %v194 = vunpack.c.l.b16 %v160
    %v195 = vunpack.c.l.b16 %v161
    %v196 = vunpack.c.l.b16 %v162
    %v197 = vunpack.c.l.b16 %v163
    %v198 = vunpack.c.l.b16 %v164
    %v199 = vunpack.c.l.b16 %v165
    %v200 = vpack.c.b16 %v185, %v184
    %v201 = vpack.c.b16 %v187, %v186
    %v202 = vpack.c.b16 %v189, %v188
    %v203 = vpack.c.b16 %v191, %v190
    %v204 = vpack.c.b16 %v193, %v192
    %v205 = vpack.c.b16 %v195, %v194
    %v206 = vpack.c.b16 %v197, %v196
    %v207 = vpack.c.b16 %v199, %v198
    %216 = vmatpush.bf16.msra.mxu0 %v207
    %217 = vmatpush.bf16.msra.mxu0 %v206
    %218 = vmatpush.bf16.msra.mxu0 %v205
    %219 = vmatpush.bf16.msra.mxu0 %v204
    %220 = vmatpush.bf16.msra.mxu0 %v203
    %221 = vmatpush.bf16.msra.mxu0 %v202
    %222 = vmatpush.bf16.msra.mxu0 %v201
    %223 = vmatpush.bf16.msra.mxu0 %v200
    %224 = vmatmul.bf16.gmra.mxu0 %v148
    %v225 = vpop.f32.mrf.mxu0
    %v226 = vadd.f32 %v167, %v225
    %v227 = vpop.f32.mrf.mxu0
    %v228 = vadd.f32 %v167, %v227
    %229 = vdwg.mxu0
    %v230 = vmax.f32 %v226, 0.0
    %v231 = vmax.f32 %v228, 0.0
    %v232 = vpack.c.bf16 %v231, %v230
    %s233 = scalar_lea.vmem [#allocation5], 128
    %v234 = vld [vmem:[%s233] sm:$0xf]
    %v235 = vld [vmem:[%s233 + $0x4] sm:$0xf]
    %v236 = vld [vmem:[%s233 + $0x8] sm:$0xf]
    %v237 = vld [vmem:[%s233 + $0xc] sm:$0xf]
    %v238 = vld [vmem:[%s233 + $0x10] sm:$0xf]
    %v239 = vld [vmem:[%s233 + $0x14] sm:$0xf]
    %v240 = vld [vmem:[%s233 + $0x18] sm:$0xf]
    %v241 = vld [vmem:[%s233 + $0x1c] sm:$0xf]
    %v242 = vld [vmem:[%s233 + $0x20] sm:$0xf]
    %v243 = vld [vmem:[%s233 + $0x24] sm:$0xf]
    %v244 = vld [vmem:[%s233 + $0x28] sm:$0xf]
    %v245 = vld [vmem:[%s233 + $0x2c] sm:$0xf]
    %v246 = vld [vmem:[%s233 + $0x30] sm:$0xf]
    %v247 = vld [vmem:[%s233 + $0x34] sm:$0xf]
    %v248 = vld [vmem:[%s233 + $0x38] sm:$0xf]
    %v249 = vld [vmem:[%s233 + $0x3c] sm:$0xf]
    %v250 = vld [vmem:[#allocation7 + $0x2] sm:$0x1]
    %v251 = vperm.slane %v250, 0
    %v268 = vunpack.c.l.b16 %v234
    %v269 = vunpack.c.l.b16 %v235
    %v270 = vunpack.c.l.b16 %v236
    %v271 = vunpack.c.l.b16 %v237
    %v272 = vunpack.c.l.b16 %v238
    %v273 = vunpack.c.l.b16 %v239
    %v274 = vunpack.c.l.b16 %v240
    %v275 = vunpack.c.l.b16 %v241
    %v276 = vunpack.c.l.b16 %v242
    %v277 = vunpack.c.l.b16 %v243
    %v278 = vunpack.c.l.b16 %v244
    %v279 = vunpack.c.l.b16 %v245
    %v280 = vunpack.c.l.b16 %v246
    %v281 = vunpack.c.l.b16 %v247
    %v282 = vunpack.c.l.b16 %v248
    %v283 = vunpack.c.l.b16 %v249
    %v284 = vpack.c.b16 %v269, %v268
    %v285 = vpack.c.b16 %v271, %v270
    %v286 = vpack.c.b16 %v273, %v272
    %v287 = vpack.c.b16 %v275, %v274
    %v288 = vpack.c.b16 %v277, %v276
    %v289 = vpack.c.b16 %v279, %v278
    %v290 = vpack.c.b16 %v281, %v280
    %v291 = vpack.c.b16 %v283, %v282
    %300 = vmatpush.bf16.msra.mxu0 %v291
    %301 = vmatpush.bf16.msra.mxu0 %v290
    %302 = vmatpush.bf16.msra.mxu0 %v289
    %303 = vmatpush.bf16.msra.mxu0 %v288
    %304 = vmatpush.bf16.msra.mxu0 %v287
    %305 = vmatpush.bf16.msra.mxu0 %v286
    %306 = vmatpush.bf16.msra.mxu0 %v285
    %307 = vmatpush.bf16.msra.mxu0 %v284
    %308 = vmatmul.bf16.gmra.mxu0 %v232
    %v309 = vpop.f32.mrf.mxu0
    %v310 = vadd.f32 %v251, %v309
    %v311 = vpop.f32.mrf.mxu0
    %v312 = vadd.f32 %v251, %v311
    %313 = vdwg.mxu0
    %v314 = vmax.f32 %v310, 0.0
    %v315 = vmax.f32 %v312, 0.0
    %v316 = vpack.c.bf16 %v315, %v314
    %s317 = scalar_lea.vmem [#allocation5], 192
    %v318 = vld [vmem:[%s317] sm:$0xf]
    %v319 = vld [vmem:[%s317 + $0x4] sm:$0xf]
    %v320 = vld [vmem:[%s317 + $0x8] sm:$0xf]
    %v321 = vld [vmem:[%s317 + $0xc] sm:$0xf]
    %v322 = vld [vmem:[%s317 + $0x10] sm:$0xf]
    %v323 = vld [vmem:[%s317 + $0x14] sm:$0xf]
    %v324 = vld [vmem:[%s317 + $0x18] sm:$0xf]
    %v325 = vld [vmem:[%s317 + $0x1c] sm:$0xf]
    %v326 = vld [vmem:[%s317 + $0x20] sm:$0xf]
    %v327 = vld [vmem:[%s317 + $0x24] sm:$0xf]
    %v328 = vld [vmem:[%s317 + $0x28] sm:$0xf]
    %v329 = vld [vmem:[%s317 + $0x2c] sm:$0xf]
    %v330 = vld [vmem:[%s317 + $0x30] sm:$0xf]
    %v331 = vld [vmem:[%s317 + $0x34] sm:$0xf]
    %v332 = vld [vmem:[%s317 + $0x38] sm:$0xf]
    %v333 = vld [vmem:[%s317 + $0x3c] sm:$0xf]
    %v334 = vld [vmem:[#allocation7 + $0x3] sm:$0x1]
    %v335 = vperm.slane %v334, 0
    %v352 = vunpack.c.l.b16 %v318
    %v353 = vunpack.c.l.b16 %v319
    %v354 = vunpack.c.l.b16 %v320
    %v355 = vunpack.c.l.b16 %v321
    %v356 = vunpack.c.l.b16 %v322
    %v357 = vunpack.c.l.b16 %v323
    %v358 = vunpack.c.l.b16 %v324
    %v359 = vunpack.c.l.b16 %v325
    %v360 = vunpack.c.l.b16 %v326
    %v361 = vunpack.c.l.b16 %v327
    %v362 = vunpack.c.l.b16 %v328
    %v363 = vunpack.c.l.b16 %v329
    %v364 = vunpack.c.l.b16 %v330
    %v365 = vunpack.c.l.b16 %v331
    %v366 = vunpack.c.l.b16 %v332
    %v367 = vunpack.c.l.b16 %v333
    %v368 = vpack.c.b16 %v353, %v352
    %v369 = vpack.c.b16 %v355, %v354
    %v370 = vpack.c.b16 %v357, %v356
    %v371 = vpack.c.b16 %v359, %v358
    %v372 = vpack.c.b16 %v361, %v360
    %v373 = vpack.c.b16 %v363, %v362
    %v374 = vpack.c.b16 %v365, %v364
    %v375 = vpack.c.b16 %v367, %v366
    %384 = vmatpush.bf16.msra.mxu0 %v375
    %385 = vmatpush.bf16.msra.mxu0 %v374
    %386 = vmatpush.bf16.msra.mxu0 %v373
    %387 = vmatpush.bf16.msra.mxu0 %v372
    %388 = vmatpush.bf16.msra.mxu0 %v371
    %389 = vmatpush.bf16.msra.mxu0 %v370
    %390 = vmatpush.bf16.msra.mxu0 %v369
    %391 = vmatpush.bf16.msra.mxu0 %v368
    %392 = vmatmul.bf16.gmra.mxu0 %v316
    %v393 = vpop.f32.mrf.mxu0
    %v394 = vadd.f32 %v335, %v393
    %v395 = vpop.f32.mrf.mxu0
    %v396 = vadd.f32 %v335, %v395
    %397 = vdwg.mxu0
    %v398 = vmax.f32 %v394, 0.0
    %v399 = vmax.f32 %v396, 0.0
    %v400 = vpack.c.bf16 %v399, %v398
    %s401 = scalar_lea.vmem [#allocation5], 256
    %v402 = vld [vmem:[%s401] sm:$0xf]
    %v403 = vld [vmem:[%s401 + $0x4] sm:$0xf]
    %v404 = vld [vmem:[%s401 + $0x8] sm:$0xf]
    %v405 = vld [vmem:[%s401 + $0xc] sm:$0xf]
    %v406 = vld [vmem:[%s401 + $0x10] sm:$0xf]
    %v407 = vld [vmem:[%s401 + $0x14] sm:$0xf]
    %v408 = vld [vmem:[%s401 + $0x18] sm:$0xf]
    %v409 = vld [vmem:[%s401 + $0x1c] sm:$0xf]
    %v410 = vld [vmem:[%s401 + $0x20] sm:$0xf]
    %v411 = vld [vmem:[%s401 + $0x24] sm:$0xf]
    %v412 = vld [vmem:[%s401 + $0x28] sm:$0xf]
    %v413 = vld [vmem:[%s401 + $0x2c] sm:$0xf]
    %v414 = vld [vmem:[%s401 + $0x30] sm:$0xf]
    %v415 = vld [vmem:[%s401 + $0x34] sm:$0xf]
    %v416 = vld [vmem:[%s401 + $0x38] sm:$0xf]
    %v417 = vld [vmem:[%s401 + $0x3c] sm:$0xf]
    %v434 = vunpack.c.l.b16 %v402
    %v435 = vunpack.c.l.b16 %v403
    %v436 = vunpack.c.l.b16 %v404
    %v437 = vunpack.c.l.b16 %v405
    %v438 = vunpack.c.l.b16 %v406
    %v439 = vunpack.c.l.b16 %v407
    %v440 = vunpack.c.l.b16 %v408
    %v441 = vunpack.c.l.b16 %v409
    %v442 = vunpack.c.l.b16 %v410
    %v443 = vunpack.c.l.b16 %v411
    %v444 = vunpack.c.l.b16 %v412
    %v445 = vunpack.c.l.b16 %v413
    %v446 = vunpack.c.l.b16 %v414
    %v447 = vunpack.c.l.b16 %v415
    %v448 = vunpack.c.l.b16 %v416
    %v449 = vunpack.c.l.b16 %v417
    %v450 = vpack.c.b16 %v435, %v434
    %v451 = vpack.c.b16 %v437, %v436
    %v452 = vpack.c.b16 %v439, %v438
    %v453 = vpack.c.b16 %v441, %v440
    %v454 = vpack.c.b16 %v443, %v442
    %v455 = vpack.c.b16 %v445, %v444
    %v456 = vpack.c.b16 %v447, %v446
    %v457 = vpack.c.b16 %v449, %v448
    %466 = vmatpush.bf16.msra.mxu0 %v457
    %467 = vmatpush.bf16.msra.mxu0 %v456
    %468 = vmatpush.bf16.msra.mxu0 %v455
    %469 = vmatpush.bf16.msra.mxu0 %v454
    %470 = vmatpush.bf16.msra.mxu0 %v453
    %471 = vmatpush.bf16.msra.mxu0 %v452
    %472 = vmatpush.bf16.msra.mxu0 %v451
    %473 = vmatpush.bf16.msra.mxu0 %v450
    %474 = vmatmul.bf16.gmra.mxu0 %v400
    %v475 = vpop.f32.mrf.mxu0
    %v476 = vadd.f32 0.0, %v475
    %v477 = vpop.f32.mrf.mxu0
    %v478 = vadd.f32 0.0, %v477
    %479 = vdwg.mxu0
    %v480 = vpack.c.bf16 %v478, %v476
    %s481 = scalar_lea.vmem [#allocation5], 320
    %v482 = vld [vmem:[%s481] sm:$0xf]
    %v483 = vld [vmem:[%s481 + $0x4] sm:$0xf]
    %v484 = vld [vmem:[%s481 + $0x8] sm:$0xf]
    %v485 = vld [vmem:[%s481 + $0xc] sm:$0xf]
    %v486 = vld [vmem:[%s481 + $0x10] sm:$0xf]
    %v487 = vld [vmem:[%s481 + $0x14] sm:$0xf]
    %v488 = vld [vmem:[%s481 + $0x18] sm:$0xf]
    %v489 = vld [vmem:[%s481 + $0x1c] sm:$0xf]
    %v490 = vld [vmem:[%s481 + $0x20] sm:$0xf]
    %v491 = vld [vmem:[%s481 + $0x24] sm:$0xf]
    %v492 = vld [vmem:[%s481 + $0x28] sm:$0xf]
    %v493 = vld [vmem:[%s481 + $0x2c] sm:$0xf]
    %v494 = vld [vmem:[%s481 + $0x30] sm:$0xf]
    %v495 = vld [vmem:[%s481 + $0x34] sm:$0xf]
    %v496 = vld [vmem:[%s481 + $0x38] sm:$0xf]
    %v497 = vld [vmem:[%s481 + $0x3c] sm:$0xf]
    %v498 = vld [vmem:[#allocation7 + $0x4] sm:$0x1]
    %v499 = vperm.slane %v498, 0
    %v516 = vunpack.c.l.b16 %v482
    %v517 = vunpack.c.l.b16 %v483
    %v518 = vunpack.c.l.b16 %v484
    %v519 = vunpack.c.l.b16 %v485
    %v520 = vunpack.c.l.b16 %v486
    %v521 = vunpack.c.l.b16 %v487
    %v522 = vunpack.c.l.b16 %v488
    %v523 = vunpack.c.l.b16 %v489
    %v524 = vunpack.c.l.b16 %v490
    %v525 = vunpack.c.l.b16 %v491
    %v526 = vunpack.c.l.b16 %v492
    %v527 = vunpack.c.l.b16 %v493
    %v528 = vunpack.c.l.b16 %v494
    %v529 = vunpack.c.l.b16 %v495
    %v530 = vunpack.c.l.b16 %v496
    %v531 = vunpack.c.l.b16 %v497
    %v532 = vpack.c.b16 %v517, %v516
    %v533 = vpack.c.b16 %v519, %v518
    %v534 = vpack.c.b16 %v521, %v520
    %v535 = vpack.c.b16 %v523, %v522
    %v536 = vpack.c.b16 %v525, %v524
    %v537 = vpack.c.b16 %v527, %v526
    %v538 = vpack.c.b16 %v529, %v528
    %v539 = vpack.c.b16 %v531, %v530
    %548 = vmatpush.bf16.msra.mxu0 %v539
    %549 = vmatpush.bf16.msra.mxu0 %v538
    %550 = vmatpush.bf16.msra.mxu0 %v537
    %551 = vmatpush.bf16.msra.mxu0 %v536
    %552 = vmatpush.bf16.msra.mxu0 %v535
    %553 = vmatpush.bf16.msra.mxu0 %v534
    %554 = vmatpush.bf16.msra.mxu0 %v533
    %555 = vmatpush.bf16.msra.mxu0 %v532
    %556 = vmatmul.bf16.gmra.mxu0 %v480
    %v557 = vpop.f32.mrf.mxu0
    %v558 = vadd.f32 %v499, %v557
    %v559 = vpop.f32.mrf.mxu0
    %v560 = vadd.f32 %v499, %v559
    %561 = vdwg.mxu0
    %v562 = vpack.c.bf16 %v558, %v558
    %v563 = vpack.c.bf16 %v560, %v560
    %564 = vst [vmem:[#allocation8] sm:$0xf] %v562
    %565 = vst [vmem:[#allocation8 + $0x4] sm:$0xf] %v563
    // Predicated region
    $region26: #{tpu_custom_call.1} parent=1 // pred_check
      _
    $region27: #{tpu_custom_call.1} parent=1 // pred_check_branch
      %567 = sbr.rel (0) target = $region29
    $region28: #{tpu_custom_call.1} parent=1 // pred_region
      %569 = vsyncadd [#allocation4], 0
      %s570 = sshll.u32 [#allocation8], 4
      %s571 = int_to_ptr.vmem [resolvable:$true] %s570
      %s572 = sshll.u32 %s3, 4
      %s573 = int_to_ptr.hbm [resolvable:$true] %s572
      %578 = dma.vmem_to_hbm [thread:$0]  %s571, 128, %s573, [#allocation4], 64, 64, 4
    $region29: #{tpu_custom_call.1} parent=1 // pred_fallthru
      _
    // Predicated region
    $region30: #{tpu_custom_call.1} parent=1 // pred_check
      _
    $region31: #{tpu_custom_call.1} parent=1 // pred_check_branch
      %580 = sbr.rel (0) target = $region33
    $region32: #{tpu_custom_call.1} parent=1 // pred_region
      %582 = dma.done [#allocation4], 128
    $region33: #{tpu_custom_call.1} parent=1 // pred_fallthru
      _
    %583 = vsyncpa [#allocation3], 1
    %584 = vsyncpa [#allocation6], 1
    %585 = vsyncpa [#allocation4], 1

</llo_original>
